<compile_context>
chip_gen: v7x
topology: tpu7x:2x2x1
jax: 0.10.0
libtpu: 0.0.40
codegen_flags: <defaults>
</compile_context>

<pallas_src>
import jax
import jax.numpy as jnp
from jax.experimental import pallas as pl
from jax.experimental.pallas import tpu as pltpu

DIMS = (10, 20, 30, 40, 50)   # MyNet layer widths (in, h1, h2, h3, out)
IN_DIM = DIMS[0]
OUT_DIM = DIMS[-1]
PAD = 128                     # lane-dense feature padding for the MXU chain
OUT_PAD = 64                  # narrow f32 output slab (>= 50 real outputs)
N_LAYERS = len(DIMS) - 1


def _round_up(a, m):
    return -(-a // m) * m


def mlp_kernel(x_ref, w_ref, b_ref, o_ref, xpad_ref):
    # Lane-pad the (tile, 10) f32 input block to K=128 inside VMEM.  Padded
    # lanes are zeroed every step (trivial VPU cost) so no garbage can leak
    # into the first matmul.
    xpad_ref[...] = jnp.zeros_like(xpad_ref)
    xpad_ref[:, :IN_DIM] = x_ref[...]

    # bf16 MXU inputs, f32 accumulation; bias add / ReLU in f32 on the VPU.
    h = jnp.dot(xpad_ref[...].astype(jnp.bfloat16), w_ref[0],
                preferred_element_type=jnp.float32) + b_ref[0]
    h = jnp.maximum(h, 0.0).astype(jnp.bfloat16)
    h = jnp.dot(h, w_ref[1], preferred_element_type=jnp.float32) + b_ref[1]
    h = jnp.maximum(h, 0.0).astype(jnp.bfloat16)
    h = jnp.dot(h, w_ref[2], preferred_element_type=jnp.float32) + b_ref[2]
    h = jnp.maximum(h, 0.0).astype(jnp.bfloat16)
    h = jnp.dot(h, w_ref[3], preferred_element_type=jnp.float32) + b_ref[3]

    # Narrow f32 writeback (first 64 lanes cover the 50 real outputs).
    o_ref[...] = h[:, :OUT_PAD].astype(o_ref.dtype)


def init_params(key):
    """Deterministic init mimicking nn.Linear default U(-1/sqrt(fan_in), +).

    Weights are stored (in_features, out_features) so the kernel computes
    x @ W + b (transpose of PyTorch's (out, in) layout) — same math.
    """
    params = {}
    keys = jax.random.split(key, 2 * N_LAYERS)
    for i, (fan_in, fan_out) in enumerate(zip(DIMS[:-1], DIMS[1:])):
        bound = 1.0 / jnp.sqrt(float(fan_in))
        wk, bk = keys[2 * i], keys[2 * i + 1]
        params[f"w{i+1}"] = jax.random.uniform(
            wk, (fan_in, fan_out), jnp.float32, -bound, bound)
        params[f"b{i+1}"] = jax.random.uniform(
            bk, (1, fan_out), jnp.float32, -bound, bound)
    return params


def pack_params(params):
    """Pack all layers into one bf16 weight slab and one f32 bias slab.

    Zero padding of unused rows/lanes guarantees padded lanes stay 0 through
    ReLU and never contaminate real outputs.
    """
    w = jnp.zeros((N_LAYERS, PAD, PAD), jnp.float32)
    b = jnp.zeros((N_LAYERS, 1, PAD), jnp.float32)
    for i, (fi, fo) in enumerate(zip(DIMS[:-1], DIMS[1:])):
        w = w.at[i, :fi, :fo].set(params[f"w{i+1}"])
        b = b.at[i, 0, :fo].set(params[f"b{i+1}"].reshape(-1))
    return {"w": w.astype(jnp.bfloat16),   # bf16 MXU fast path
            "b": b}                        # biases stay f32


def mynet_forward(x, packed, *, tile_b=1024):
    """x: (B, 10) f32.  packed: output of pack_params()."""
    B, in_dim = x.shape
    assert in_dim == IN_DIM, in_dim

    # Batch tiling: round B to sublane multiple, cap the tile, and for large
    # batches keep >= 2 grid steps so both v7x TensorCores get work.
    b8 = _round_up(B, 8)
    tile = min(_round_up(max(tile_b, 8), 8), b8)
    if b8 >= 16:
        tile = min(tile, _round_up(-(-b8 // 2), 8))
    tile = max(tile, 8)
    pad_b = _round_up(b8, tile)
    grid = (pad_b // tile,)

    if pad_b != B:  # pad batch only (rows beyond B are sliced off at the end)
        x = jnp.pad(x, ((0, pad_b - B), (0, 0)))

    # Input/output tiled over the batch; weights/biases use a constant block
    # index so they stay VMEM-resident across grid steps.
    x_spec = pl.BlockSpec((tile, IN_DIM), lambda i: (i, 0))
    w_spec = pl.BlockSpec((N_LAYERS, PAD, PAD), lambda i: (0, 0, 0))
    b_spec = pl.BlockSpec((N_LAYERS, 1, PAD), lambda i: (0, 0, 0))
    o_spec = pl.BlockSpec((tile, OUT_PAD), lambda i: (i, 0))

    flops = 2 * pad_b * PAD * PAD * N_LAYERS
    bytes_accessed = (pad_b * IN_DIM * 4                       # f32 input
                      + N_LAYERS * (PAD * PAD * 2 + PAD * 4)   # bf16 W + f32 b
                      + pad_b * OUT_PAD * 4)                   # f32 output

    out_p = pl.pallas_call(
        mlp_kernel,
        out_shape=jax.ShapeDtypeStruct((pad_b, OUT_PAD), jnp.float32),
        grid=grid,
        in_specs=[x_spec, w_spec, b_spec],
        out_specs=o_spec,
        scratch_shapes=[pltpu.VMEM((tile, PAD), jnp.float32)],
        compiler_params=pltpu.CompilerParams(
            dimension_semantics=("parallel",)),
        cost_estimate=pl.CostEstimate(
            flops=flops, transcendentals=0, bytes_accessed=bytes_accessed),
    )(x, packed["w"], packed["b"])

    return out_p[:B, :OUT_DIM]


def reference_forward(x, params):
    """Pure-f32 reference (matches the PyTorch module semantics)."""
    h = jnp.maximum(x @ params["w1"] + params["b1"], 0.0)
    h = jnp.maximum(h @ params["w2"] + params["b2"], 0.0)
    h = jnp.maximum(h @ params["w3"] + params["b3"], 0.0)
    return h @ params["w4"] + params["b4"]


if __name__ == "__main__":
    key = jax.random.PRNGKey(0)
    pkey, xkey = jax.random.split(key)

    params = init_params(pkey)
    packed = pack_params(params)                 # padding / bf16 cast done once
    x = jax.random.normal(xkey, (8, 10), jnp.float32)   # batch=8, in=10

    out = mynet_forward(x, packed)
    out = jax.block_until_ready(out)

    ref = reference_forward(x, params)
    assert out.shape == (8, 50), out.shape
    # bf16 MXU inputs with f32 accumulation -> loosened tolerance vs f32 ref.
    assert jnp.allclose(out, ref, atol=3e-2, rtol=3e-2), "mismatch vs reference"

    print("KERNEL_OK")
</pallas_src>

<mosaic_0001>
module attributes {stable_mosaic.version = 11 : i64} {
  func.func @mlp_kernel(%arg0: i32, %arg1: memref<8x10xf32, #tpu.memory_space<vmem>>, %arg2: memref<4x128x128xbf16, #tpu.memory_space<vmem>>, %arg3: memref<4x1x128xf32, #tpu.memory_space<vmem>>, %arg4: memref<8x64xf32, #tpu.memory_space<vmem>>, %arg5: memref<8x128xf32, #tpu.memory_space<vmem>>) attributes {dimension_semantics = [#tpu.dimension_semantics<parallel>], iteration_bounds = array<i64: 1>, scalar_prefetch = 0 : i64, scratch_operands = 1 : i64, tpu.core_type = #tpu.core_type<tc>, window_params = [{transform_indices = @transform_0, window_bounds = array<i64: 8, 10>}, {pipeline_mode = #tpu.pipeline_mode<synchronous>, transform_indices = @transform_1, window_bounds = array<i64: 4, 128, 128>}, {pipeline_mode = #tpu.pipeline_mode<synchronous>, transform_indices = @transform_2, window_bounds = array<i64: 4, 1, 128>}, {transform_indices = @transform_3, window_bounds = array<i64: 8, 64>}]} {
    %cst = arith.constant 0.000000e+00 : f32
    %0 = vector.broadcast %cst : f32 to vector<8x128xf32>
    %c0 = arith.constant 0 : index
    %c0_0 = arith.constant 0 : index
    %1 = vector.load %arg5[%c0, %c0_0] : memref<8x128xf32, #tpu.memory_space<vmem>>, vector<8x128xf32>
    tpu.vector_store %arg5[%c0, %c0_0], %0 {strides = array<i32>} : memref<8x128xf32, #tpu.memory_space<vmem>>, vector<8x128xf32>,
    %c0_1 = arith.constant 0 : index
    %c0_2 = arith.constant 0 : index
    %2 = vector.load %arg1[%c0_1, %c0_2] : memref<8x10xf32, #tpu.memory_space<vmem>>, vector<8x10xf32>
    %c0_3 = arith.constant 0 : index
    %c0_4 = arith.constant 0 : index
    %3 = vector.load %arg5[%c0_3, %c0_4] : memref<8x128xf32, #tpu.memory_space<vmem>>, vector<8x10xf32>
    tpu.vector_store %arg5[%c0_3, %c0_4], %2 {strides = array<i32>} : memref<8x128xf32, #tpu.memory_space<vmem>>, vector<8x10xf32>,
    %c0_5 = arith.constant 0 : index
    %c0_6 = arith.constant 0 : index
    %4 = vector.load %arg5[%c0_5, %c0_6] : memref<8x128xf32, #tpu.memory_space<vmem>>, vector<8x128xf32>
    %5 = arith.truncf %4 : vector<8x128xf32> to vector<8x128xbf16>
    %c0_7 = arith.constant 0 : index
    %c0_8 = arith.constant 0 : index
    %c0_9 = arith.constant 0 : index
    %6 = vector.load %arg2[%c0_7, %c0_8, %c0_9] : memref<4x128x128xbf16, #tpu.memory_space<vmem>>, vector<1x128x128xbf16>
    %7 = vector.shape_cast %6 : vector<1x128x128xbf16> to vector<128x128xbf16>
    %cst_10 = arith.constant dense<0.000000e+00> : vector<8x128xf32>
    %8 = tpu.matmul %5, %7, %cst_10 {dimension_numbers = #tpu.dot_dimension_numbers<[1], [0], [0], [1], [0, 0, 1, 1], [], []>} : vector<8x128xbf16>, vector<128x128xbf16>, vector<8x128xf32> -> vector<8x128xf32>
    %c0_11 = arith.constant 0 : index
    %c0_12 = arith.constant 0 : index
    %c0_13 = arith.constant 0 : index
    %9 = vector.load %arg3[%c0_11, %c0_12, %c0_13] : memref<4x1x128xf32, #tpu.memory_space<vmem>>, vector<1x1x128xf32>
    %10 = vector.shape_cast %9 : vector<1x1x128xf32> to vector<1x128xf32>
    %11 = vector.broadcast %10 : vector<1x128xf32> to vector<8x128xf32>
    %12 = arith.addf %8, %11 : vector<8x128xf32>
    %cst_14 = arith.constant 0.000000e+00 : f32
    %13 = vector.broadcast %cst_14 : f32 to vector<8x128xf32>
    %14 = arith.maximumf %12, %13 : vector<8x128xf32>
    %15 = arith.truncf %14 : vector<8x128xf32> to vector<8x128xbf16>
    %c1 = arith.constant 1 : index
    %c0_15 = arith.constant 0 : index
    %c0_16 = arith.constant 0 : index
    %16 = vector.load %arg2[%c1, %c0_15, %c0_16] : memref<4x128x128xbf16, #tpu.memory_space<vmem>>, vector<1x128x128xbf16>
    %17 = vector.shape_cast %16 : vector<1x128x128xbf16> to vector<128x128xbf16>
    %cst_17 = arith.constant dense<0.000000e+00> : vector<8x128xf32>
    %18 = tpu.matmul %15, %17, %cst_17 {dimension_numbers = #tpu.dot_dimension_numbers<[1], [0], [0], [1], [0, 0, 1, 1], [], []>} : vector<8x128xbf16>, vector<128x128xbf16>, vector<8x128xf32> -> vector<8x128xf32>
    %c1_18 = arith.constant 1 : index
    %c0_19 = arith.constant 0 : index
    %c0_20 = arith.constant 0 : index
    %19 = vector.load %arg3[%c1_18, %c0_19, %c0_20] : memref<4x1x128xf32, #tpu.memory_space<vmem>>, vector<1x1x128xf32>
    %20 = vector.shape_cast %19 : vector<1x1x128xf32> to vector<1x128xf32>
    %21 = vector.broadcast %20 : vector<1x128xf32> to vector<8x128xf32>
    %22 = arith.addf %18, %21 : vector<8x128xf32>
    %cst_21 = arith.constant 0.000000e+00 : f32
    %23 = vector.broadcast %cst_21 : f32 to vector<8x128xf32>
    %24 = arith.maximumf %22, %23 : vector<8x128xf32>
    %25 = arith.truncf %24 : vector<8x128xf32> to vector<8x128xbf16>
    %c2 = arith.constant 2 : index
    %c0_22 = arith.constant 0 : index
    %c0_23 = arith.constant 0 : index
    %26 = vector.load %arg2[%c2, %c0_22, %c0_23] : memref<4x128x128xbf16, #tpu.memory_space<vmem>>, vector<1x128x128xbf16>
    %27 = vector.shape_cast %26 : vector<1x128x128xbf16> to vector<128x128xbf16>
    %cst_24 = arith.constant dense<0.000000e+00> : vector<8x128xf32>
    %28 = tpu.matmul %25, %27, %cst_24 {dimension_numbers = #tpu.dot_dimension_numbers<[1], [0], [0], [1], [0, 0, 1, 1], [], []>} : vector<8x128xbf16>, vector<128x128xbf16>, vector<8x128xf32> -> vector<8x128xf32>
    %c2_25 = arith.constant 2 : index
    %c0_26 = arith.constant 0 : index
    %c0_27 = arith.constant 0 : index
    %29 = vector.load %arg3[%c2_25, %c0_26, %c0_27] : memref<4x1x128xf32, #tpu.memory_space<vmem>>, vector<1x1x128xf32>
    %30 = vector.shape_cast %29 : vector<1x1x128xf32> to vector<1x128xf32>
    %31 = vector.broadcast %30 : vector<1x128xf32> to vector<8x128xf32>
    %32 = arith.addf %28, %31 : vector<8x128xf32>
    %cst_28 = arith.constant 0.000000e+00 : f32
    %33 = vector.broadcast %cst_28 : f32 to vector<8x128xf32>
    %34 = arith.maximumf %32, %33 : vector<8x128xf32>
    %35 = arith.truncf %34 : vector<8x128xf32> to vector<8x128xbf16>
    %c3 = arith.constant 3 : index
    %c0_29 = arith.constant 0 : index
    %c0_30 = arith.constant 0 : index
    %36 = vector.load %arg2[%c3, %c0_29, %c0_30] : memref<4x128x128xbf16, #tpu.memory_space<vmem>>, vector<1x128x128xbf16>
    %37 = vector.shape_cast %36 : vector<1x128x128xbf16> to vector<128x128xbf16>
    %cst_31 = arith.constant dense<0.000000e+00> : vector<8x128xf32>
    %38 = tpu.matmul %35, %37, %cst_31 {dimension_numbers = #tpu.dot_dimension_numbers<[1], [0], [0], [1], [0, 0, 1, 1], [], []>} : vector<8x128xbf16>, vector<128x128xbf16>, vector<8x128xf32> -> vector<8x128xf32>
    %c3_32 = arith.constant 3 : index
    %c0_33 = arith.constant 0 : index
    %c0_34 = arith.constant 0 : index
    %39 = vector.load %arg3[%c3_32, %c0_33, %c0_34] : memref<4x1x128xf32, #tpu.memory_space<vmem>>, vector<1x1x128xf32>
    %40 = vector.shape_cast %39 : vector<1x1x128xf32> to vector<1x128xf32>
    %41 = vector.broadcast %40 : vector<1x128xf32> to vector<8x128xf32>
    %42 = arith.addf %38, %41 : vector<8x128xf32>
    %43 = vector.extract_strided_slice %42 {offsets = [0, 0], sizes = [8, 64], strides = [1, 1]} : vector<8x128xf32> to vector<8x64xf32>
    %c0_35 = arith.constant 0 : index
    %c0_36 = arith.constant 0 : index
    %44 = vector.load %arg4[%c0_35, %c0_36] : memref<8x64xf32, #tpu.memory_space<vmem>>, vector<8x64xf32>
    tpu.vector_store %arg4[%c0_35, %c0_36], %43 {strides = array<i32>} : memref<8x64xf32, #tpu.memory_space<vmem>>, vector<8x64xf32>,
    return
  }
  func.func @transform_0(%arg0: i32) -> (i32, i32) {
    %c0_i32 = arith.constant 0 : i32
    %c0_i32_0 = arith.constant 0 : i32
    return %arg0, %c0_i32 : i32, i32
  }
  func.func @transform_1(%arg0: i32) -> (i32, i32, i32) {
    %c0_i32 = arith.constant 0 : i32
    %c0_i32_0 = arith.constant 0 : i32
    %c0_i32_1 = arith.constant 0 : i32
    %c0_i32_2 = arith.constant 0 : i32
    return %c0_i32, %c0_i32_0, %c0_i32_1 : i32, i32, i32
  }
  func.func @transform_2(%arg0: i32) -> (i32, i32, i32) {
    %c0_i32 = arith.constant 0 : i32
    %c0_i32_0 = arith.constant 0 : i32
    %c0_i32_1 = arith.constant 0 : i32
    %c0_i32_2 = arith.constant 0 : i32
    return %c0_i32, %c0_i32_0, %c0_i32_1 : i32, i32, i32
  }
  func.func @transform_3(%arg0: i32) -> (i32, i32) {
    %c0_i32 = arith.constant 0 : i32
    %c0_i32_0 = arith.constant 0 : i32
    return %arg0, %c0_i32 : i32, i32
  }
}

</mosaic_0001>

<llo_original>
// kernel: tpu_custom_call.1
$region0: #{tpu_custom_call.1}
  #allocation0 [shape = 'u32[]', space=smem, size = 0x4, offset = 0x4, fixed_abs, tag = 'smem constant byte address 0x4 - core index']
  #allocation1 [shape = 'u32[144,128]{1,0:T(1,128)}', space=vmem, size = 0x12000, scoped, tag = 'internal scratch']
  #allocation2 [shape = 'f32[8,128]{1,0:T(8,128)}', space=vmem, size = 0x1000, scoped, tag = 'scratch operand']
  %s0 = inlined_call_operand.hbm [shape: f32[8,10], index: 0, kind: input, shape index: {}]
  %s1 = inlined_call_operand.hbm [shape: bf16[4,128,128], index: 1, kind: input, shape index: {}]
  %s2 = inlined_call_operand.vmem [shape: f32[4,1,128], index: 2, kind: input, shape index: {}]
  %s3 = inlined_call_operand.hbm [shape: f32[8,64], index: 3, kind: output, shape index: {}]
  %s4 = sld [smem:[#allocation0]]
  $region30: #{tpu_custom_call.1} parent=0
    _
  %s6 = ssub.s32 1, %s4
  %s7 = scalar_select 0, %s6, %s4
  $region1: #{tpu_custom_call.1} parent=0
    #allocation3 [shape = 'u8[4096]{0}', space=vmem, size = 0x1000, scoped, tag = 'input window, operand 0, single buffered']
    #allocation4 [shape = 's32[1]{0}', space=sflag, size = 0x4, scoped, tag = 'scoped memory for tpu_custom_call.1']
    #allocation5 [shape = 's32[1]{0}', space=sflag, size = 0x4, scoped, tag = 'scoped memory for tpu_custom_call.1']
    #allocation6 [shape = 'u8[131072]{0}', space=vmem, size = 0x20000, scoped, tag = 'input window, operand 1, single buffered']
    #allocation7 [shape = 's32[1]{0}', space=sflag, size = 0x4, scoped, tag = 'scoped memory for tpu_custom_call.1']
    #allocation8 [shape = 'u8[4096]{0}', space=vmem, size = 0x1000, scoped, tag = 'output window, operand 0, single buffered']
    %8 = vsyncpa [#allocation4], 0
    %9 = vsyncpa [#allocation7], 0
    %10 = vsyncpa [#allocation5], 0
    // Predicated region
    $region2: #{tpu_custom_call.1} parent=1 // pred_check
      _
    $region3: #{tpu_custom_call.1} parent=1 // pred_check_branch
      %12 = sbr.rel (0) target = $region5
    $region4: #{tpu_custom_call.1} parent=1 // pred_region
      %s14 = ssub.s32 128, 128
      %15 = vsyncadd [#allocation4], %s14
      %s17 = sshll.u32 [#allocation3], 4
      %s18 = int_to_ptr.vmem [resolvable:$true] %s17
      %20 = dma.hbm_to_vmem [thread:$0]  %s0, 128, %s18, [#allocation4]
    $region5: #{tpu_custom_call.1} parent=1 // pred_fallthru
      _
    // Predicated region
    $region6: #{tpu_custom_call.1} parent=1 // pred_check
      _
    $region7: #{tpu_custom_call.1} parent=1 // pred_check_branch
      %22 = sbr.rel (0) target = $region9
    $region8: #{tpu_custom_call.1} parent=1 // pred_region
      %s24 = ssub.s32 4096, 4096
      %25 = vsyncadd [#allocation7], %s24
      %s26 = sshll.u32 [#allocation6], 4
      %s27 = int_to_ptr.vmem [resolvable:$true] %s26
      %32 = dma.hbm_to_vmem [thread:$0]  %s1, 4096, %s27, [#allocation7], 64, 64, 4
    $region9: #{tpu_custom_call.1} parent=1 // pred_fallthru
      _
    // Predicated region
    $region10: #{tpu_custom_call.1} parent=1 // pred_check
      _
    $region11: #{tpu_custom_call.1} parent=1 // pred_check_branch
      %34 = sbr.rel (0) target = $region13
    $region12: #{tpu_custom_call.1} parent=1 // pred_region
      _
    $region13: #{tpu_custom_call.1} parent=1 // pred_fallthru
      _
    // Predicated region
    $region14: #{tpu_custom_call.1} parent=1 // pred_check
      _
    $region15: #{tpu_custom_call.1} parent=1 // pred_check_branch
      %36 = sbr.rel (0) target = $region17
    $region16: #{tpu_custom_call.1} parent=1 // pred_region
      %37 = dma.done [#allocation4], 128
    $region17: #{tpu_custom_call.1} parent=1 // pred_fallthru
      _
    // Predicated region
    $region18: #{tpu_custom_call.1} parent=1 // pred_check
      _
    $region19: #{tpu_custom_call.1} parent=1 // pred_check_branch
      %39 = sbr.rel (0) target = $region21
    $region20: #{tpu_custom_call.1} parent=1 // pred_region
      %40 = dma.done [#allocation7], 4096
    $region21: #{tpu_custom_call.1} parent=1 // pred_fallthru
      _
    %42 = vst [vmem:[#allocation2] sm:$0xff] 0.0
    %v43 = vld [vmem:[#allocation3] sm:$0xff]
    %vm44 = vcmask 80896
    %45 = vst.msk [vmem:[#allocation2] sm:$0xff] %vm44, %v43
    %v46 = vld [vmem:[#allocation2] sm:$0xff]
    %v47 = vpack.c.bf16 %v46, %v46
    %v48 = vld [vmem:[#allocation6] sm:$0xf]
    %v49 = vld [vmem:[#allocation6 + $0x4] sm:$0xf]
    %v50 = vld [vmem:[#allocation6 + $0x8] sm:$0xf]
    %v51 = vld [vmem:[#allocation6 + $0xc] sm:$0xf]
    %v52 = vld [vmem:[#allocation6 + $0x10] sm:$0xf]
    %v53 = vld [vmem:[#allocation6 + $0x14] sm:$0xf]
    %v54 = vld [vmem:[#allocation6 + $0x18] sm:$0xf]
    %v55 = vld [vmem:[#allocation6 + $0x1c] sm:$0xf]
    %v56 = vld [vmem:[#allocation6 + $0x20] sm:$0xf]
    %v57 = vld [vmem:[#allocation6 + $0x24] sm:$0xf]
    %v58 = vld [vmem:[#allocation6 + $0x28] sm:$0xf]
    %v59 = vld [vmem:[#allocation6 + $0x2c] sm:$0xf]
    %v60 = vld [vmem:[#allocation6 + $0x30] sm:$0xf]
    %v61 = vld [vmem:[#allocation6 + $0x34] sm:$0xf]
    %v62 = vld [vmem:[#allocation6 + $0x38] sm:$0xf]
    %v63 = vld [vmem:[#allocation6 + $0x3c] sm:$0xf]
    %v64 = vld [vmem:[%s2] sm:$0x1]
    %v66 = vlaneseq
    %v67 = vshrl.u32 %v66, 7
    %v68 = vsub.s32 0, %v67
    %v69 = vrot.slane %v64, %v68
    %v87 = vunpack.c.l.b16 %v48
    %v88 = vunpack.c.l.b16 %v49
    %v89 = vunpack.c.l.b16 %v50
    %v90 = vunpack.c.l.b16 %v51
    %v91 = vunpack.c.l.b16 %v52
    %v92 = vunpack.c.l.b16 %v53
    %v93 = vunpack.c.l.b16 %v54
    %v94 = vunpack.c.l.b16 %v55
    %v95 = vunpack.c.l.b16 %v56
    %v96 = vunpack.c.l.b16 %v57
    %v97 = vunpack.c.l.b16 %v58
    %v98 = vunpack.c.l.b16 %v59
    %v99 = vunpack.c.l.b16 %v60
    %v100 = vunpack.c.l.b16 %v61
    %v101 = vunpack.c.l.b16 %v62
    %v102 = vunpack.c.l.b16 %v63
    %v103 = vpack.c.b16 %v88, %v87
    %v104 = vpack.c.b16 %v90, %v89
    %v105 = vpack.c.b16 %v92, %v91
    %v106 = vpack.c.b16 %v94, %v93
    %v107 = vpack.c.b16 %v96, %v95
    %v108 = vpack.c.b16 %v98, %v97
    %v109 = vpack.c.b16 %v100, %v99
    %v110 = vpack.c.b16 %v102, %v101
    %119 = vmatprep.subr.bf16.mxu0 0
    %120 = vmatpush1.bf16.msra.mxu0 %v103
    %121 = vmatprep.subr.bf16.mxu0 0
    %122 = vmatpush1.bf16.msra.mxu0 %v104
    %123 = vmatprep.subr.bf16.mxu0 0
    %124 = vmatpush1.bf16.msra.mxu0 %v105
    %125 = vmatprep.subr.bf16.mxu0 0
    %126 = vmatpush1.bf16.msra.mxu0 %v106
    %127 = vmatprep.subr.bf16.mxu0 0
    %128 = vmatpush1.bf16.msra.mxu0 %v107
    %129 = vmatprep.subr.bf16.mxu0 0
    %130 = vmatpush1.bf16.msra.mxu0 %v108
    %131 = vmatprep.subr.bf16.mxu0 0
    %132 = vmatpush1.bf16.msra.mxu0 %v109
    %133 = vmatprep.subr.bf16.mxu0 0
    %134 = vmatpush1.bf16.msra.mxu0 %v110
    %135 = vmatprep.subr.bf16.mxu0 0
    %136 = vmatpush1.bf16.msra.mxu0 0
    %137 = vmatprep.subr.bf16.mxu0 0
    %138 = vmatpush1.bf16.msra.mxu0 0
    %139 = vmatprep.subr.bf16.mxu0 0
    %140 = vmatpush1.bf16.msra.mxu0 0
    %141 = vmatprep.subr.bf16.mxu0 0
    %142 = vmatpush1.bf16.msra.mxu0 0
    %143 = vmatprep.subr.bf16.mxu0 0
    %144 = vmatpush1.bf16.msra.mxu0 0
    %145 = vmatprep.subr.bf16.mxu0 0
    %146 = vmatpush1.bf16.msra.mxu0 0
    %147 = vmatprep.subr.bf16.mxu0 0
    %148 = vmatpush1.bf16.msra.mxu0 0
    %149 = vmatprep.subr.bf16.mxu0 0
    %150 = vmatpush1.bf16.msra.mxu0 0
    %151 = vmatprep.mubr.bf16.mxu0 0
    %152 = vmatmul.mubr.bf16.gmra.mrb[0].mxu0 %v47
    %v153 = vpop.f32.mrb[0].mxu0
    %v154 = vadd.f32 %v69, %v153
    %v155 = vpop.f32.mrb[0].mxu0
    %v156 = vpop.f32.mrb[0].mxu0
    %v157 = vpop.f32.mrb[0].mxu0
    %158 = vdwg.mxu0
    %v159 = vmax.f32 %v154, 0.0
    %v160 = vpack.c.bf16 %v159, %v159
    %s161 = scalar_lea.vmem [#allocation6], 64
    %v162 = vld [vmem:[%s161] sm:$0xf]
    %v163 = vld [vmem:[%s161 + $0x4] sm:$0xf]
    %v164 = vld [vmem:[%s161 + $0x8] sm:$0xf]
    %v165 = vld [vmem:[%s161 + $0xc] sm:$0xf]
    %v166 = vld [vmem:[%s161 + $0x10] sm:$0xf]
    %v167 = vld [vmem:[%s161 + $0x14] sm:$0xf]
    %v168 = vld [vmem:[%s161 + $0x18] sm:$0xf]
    %v169 = vld [vmem:[%s161 + $0x1c] sm:$0xf]
    %v170 = vld [vmem:[%s161 + $0x20] sm:$0xf]
    %v171 = vld [vmem:[%s161 + $0x24] sm:$0xf]
    %v172 = vld [vmem:[%s161 + $0x28] sm:$0xf]
    %v173 = vld [vmem:[%s161 + $0x2c] sm:$0xf]
    %v174 = vld [vmem:[%s161 + $0x30] sm:$0xf]
    %v175 = vld [vmem:[%s161 + $0x34] sm:$0xf]
    %v176 = vld [vmem:[%s161 + $0x38] sm:$0xf]
    %v177 = vld [vmem:[%s161 + $0x3c] sm:$0xf]
    %s178 = scalar_lea.vmem %s2, 1
    %v179 = vld [vmem:[%s178] sm:$0x1]
    %v181 = vlaneseq
    %v182 = vshrl.u32 %v181, 7
    %v183 = vsub.s32 0, %v182
    %v184 = vrot.slane %v179, %v183
    %v202 = vunpack.c.l.b16 %v162
    %v203 = vunpack.c.l.b16 %v163
    %v204 = vunpack.c.l.b16 %v164
    %v205 = vunpack.c.l.b16 %v165
    %v206 = vunpack.c.l.b16 %v166
    %v207 = vunpack.c.l.b16 %v167
    %v208 = vunpack.c.l.b16 %v168
    %v209 = vunpack.c.l.b16 %v169
    %v210 = vunpack.c.l.b16 %v170
    %v211 = vunpack.c.l.b16 %v171
    %v212 = vunpack.c.l.b16 %v172
    %v213 = vunpack.c.l.b16 %v173
    %v214 = vunpack.c.l.b16 %v174
    %v215 = vunpack.c.l.b16 %v175
    %v216 = vunpack.c.l.b16 %v176
    %v217 = vunpack.c.l.b16 %v177
    %v218 = vpack.c.b16 %v203, %v202
    %v219 = vpack.c.b16 %v205, %v204
    %v220 = vpack.c.b16 %v207, %v206
    %v221 = vpack.c.b16 %v209, %v208
    %v222 = vpack.c.b16 %v211, %v210
    %v223 = vpack.c.b16 %v213, %v212
    %v224 = vpack.c.b16 %v215, %v214
    %v225 = vpack.c.b16 %v217, %v216
    %234 = vmatprep.subr.bf16.mxu0 0
    %235 = vmatpush1.bf16.msra.mxu0 %v218
    %236 = vmatprep.subr.bf16.mxu0 0
    %237 = vmatpush1.bf16.msra.mxu0 %v219
    %238 = vmatprep.subr.bf16.mxu0 0
    %239 = vmatpush1.bf16.msra.mxu0 %v220
    %240 = vmatprep.subr.bf16.mxu0 0
    %241 = vmatpush1.bf16.msra.mxu0 %v221
    %242 = vmatprep.subr.bf16.mxu0 0
    %243 = vmatpush1.bf16.msra.mxu0 %v222
    %244 = vmatprep.subr.bf16.mxu0 0
    %245 = vmatpush1.bf16.msra.mxu0 %v223
    %246 = vmatprep.subr.bf16.mxu0 0
    %247 = vmatpush1.bf16.msra.mxu0 %v224
    %248 = vmatprep.subr.bf16.mxu0 0
    %249 = vmatpush1.bf16.msra.mxu0 %v225
    %250 = vmatprep.subr.bf16.mxu0 0
    %251 = vmatpush1.bf16.msra.mxu0 0
    %252 = vmatprep.subr.bf16.mxu0 0
    %253 = vmatpush1.bf16.msra.mxu0 0
    %254 = vmatprep.subr.bf16.mxu0 0
    %255 = vmatpush1.bf16.msra.mxu0 0
    %256 = vmatprep.subr.bf16.mxu0 0
    %257 = vmatpush1.bf16.msra.mxu0 0
    %258 = vmatprep.subr.bf16.mxu0 0
    %259 = vmatpush1.bf16.msra.mxu0 0
    %260 = vmatprep.subr.bf16.mxu0 0
    %261 = vmatpush1.bf16.msra.mxu0 0
    %262 = vmatprep.subr.bf16.mxu0 0
    %263 = vmatpush1.bf16.msra.mxu0 0
    %264 = vmatprep.subr.bf16.mxu0 0
    %265 = vmatpush1.bf16.msra.mxu0 0
    %266 = vmatprep.mubr.bf16.mxu0 0
    %267 = vmatmul.mubr.bf16.gmra.mrb[0].mxu0 %v160
    %v268 = vpop.f32.mrb[0].mxu0
    %v269 = vadd.f32 %v184, %v268
    %v270 = vpop.f32.mrb[0].mxu0
    %v271 = vpop.f32.mrb[0].mxu0
    %v272 = vpop.f32.mrb[0].mxu0
    %273 = vdwg.mxu0
    %v274 = vmax.f32 %v269, 0.0
    %v275 = vpack.c.bf16 %v274, %v274
    %s276 = scalar_lea.vmem [#allocation6], 128
    %v277 = vld [vmem:[%s276] sm:$0xf]
    %v278 = vld [vmem:[%s276 + $0x4] sm:$0xf]
    %v279 = vld [vmem:[%s276 + $0x8] sm:$0xf]
    %v280 = vld [vmem:[%s276 + $0xc] sm:$0xf]
    %v281 = vld [vmem:[%s276 + $0x10] sm:$0xf]
    %v282 = vld [vmem:[%s276 + $0x14] sm:$0xf]
    %v283 = vld [vmem:[%s276 + $0x18] sm:$0xf]
    %v284 = vld [vmem:[%s276 + $0x1c] sm:$0xf]
    %v285 = vld [vmem:[%s276 + $0x20] sm:$0xf]
    %v286 = vld [vmem:[%s276 + $0x24] sm:$0xf]
    %v287 = vld [vmem:[%s276 + $0x28] sm:$0xf]
    %v288 = vld [vmem:[%s276 + $0x2c] sm:$0xf]
    %v289 = vld [vmem:[%s276 + $0x30] sm:$0xf]
    %v290 = vld [vmem:[%s276 + $0x34] sm:$0xf]
    %v291 = vld [vmem:[%s276 + $0x38] sm:$0xf]
    %v292 = vld [vmem:[%s276 + $0x3c] sm:$0xf]
    %s293 = scalar_lea.vmem %s2, 2
    %v294 = vld [vmem:[%s293] sm:$0x1]
    %v296 = vlaneseq
    %v297 = vshrl.u32 %v296, 7
    %v298 = vsub.s32 0, %v297
    %v299 = vrot.slane %v294, %v298
    %v317 = vunpack.c.l.b16 %v277
    %v318 = vunpack.c.l.b16 %v278
    %v319 = vunpack.c.l.b16 %v279
    %v320 = vunpack.c.l.b16 %v280
    %v321 = vunpack.c.l.b16 %v281
    %v322 = vunpack.c.l.b16 %v282
    %v323 = vunpack.c.l.b16 %v283
    %v324 = vunpack.c.l.b16 %v284
    %v325 = vunpack.c.l.b16 %v285
    %v326 = vunpack.c.l.b16 %v286
    %v327 = vunpack.c.l.b16 %v287
    %v328 = vunpack.c.l.b16 %v288
    %v329 = vunpack.c.l.b16 %v289
    %v330 = vunpack.c.l.b16 %v290
    %v331 = vunpack.c.l.b16 %v291
    %v332 = vunpack.c.l.b16 %v292
    %v333 = vpack.c.b16 %v318, %v317
    %v334 = vpack.c.b16 %v320, %v319
    %v335 = vpack.c.b16 %v322, %v321
    %v336 = vpack.c.b16 %v324, %v323
    %v337 = vpack.c.b16 %v326, %v325
    %v338 = vpack.c.b16 %v328, %v327
    %v339 = vpack.c.b16 %v330, %v329
    %v340 = vpack.c.b16 %v332, %v331
    %349 = vmatprep.subr.bf16.mxu0 0
    %350 = vmatpush1.bf16.msra.mxu0 %v333
    %351 = vmatprep.subr.bf16.mxu0 0
    %352 = vmatpush1.bf16.msra.mxu0 %v334
    %353 = vmatprep.subr.bf16.mxu0 0
    %354 = vmatpush1.bf16.msra.mxu0 %v335
    %355 = vmatprep.subr.bf16.mxu0 0
    %356 = vmatpush1.bf16.msra.mxu0 %v336
    %357 = vmatprep.subr.bf16.mxu0 0
    %358 = vmatpush1.bf16.msra.mxu0 %v337
    %359 = vmatprep.subr.bf16.mxu0 0
    %360 = vmatpush1.bf16.msra.mxu0 %v338
    %361 = vmatprep.subr.bf16.mxu0 0
    %362 = vmatpush1.bf16.msra.mxu0 %v339
    %363 = vmatprep.subr.bf16.mxu0 0
    %364 = vmatpush1.bf16.msra.mxu0 %v340
    %365 = vmatprep.subr.bf16.mxu0 0
    %366 = vmatpush1.bf16.msra.mxu0 0
    %367 = vmatprep.subr.bf16.mxu0 0
    %368 = vmatpush1.bf16.msra.mxu0 0
    %369 = vmatprep.subr.bf16.mxu0 0
    %370 = vmatpush1.bf16.msra.mxu0 0
    %371 = vmatprep.subr.bf16.mxu0 0
    %372 = vmatpush1.bf16.msra.mxu0 0
    %373 = vmatprep.subr.bf16.mxu0 0
    %374 = vmatpush1.bf16.msra.mxu0 0
    %375 = vmatprep.subr.bf16.mxu0 0
    %376 = vmatpush1.bf16.msra.mxu0 0
    %377 = vmatprep.subr.bf16.mxu0 0
    %378 = vmatpush1.bf16.msra.mxu0 0
    %379 = vmatprep.subr.bf16.mxu0 0
    %380 = vmatpush1.bf16.msra.mxu0 0
    %381 = vmatprep.mubr.bf16.mxu0 0
    %382 = vmatmul.mubr.bf16.gmra.mrb[0].mxu0 %v275
    %v383 = vpop.f32.mrb[0].mxu0
    %v384 = vadd.f32 %v299, %v383
    %v385 = vpop.f32.mrb[0].mxu0
    %v386 = vpop.f32.mrb[0].mxu0
    %v387 = vpop.f32.mrb[0].mxu0
    %388 = vdwg.mxu0
    %v389 = vmax.f32 %v384, 0.0
    %v390 = vpack.c.bf16 %v389, %v389
    %s391 = scalar_lea.vmem [#allocation6], 192
    %v392 = vld [vmem:[%s391] sm:$0xf]
    %v393 = vld [vmem:[%s391 + $0x4] sm:$0xf]
    %v394 = vld [vmem:[%s391 + $0x8] sm:$0xf]
    %v395 = vld [vmem:[%s391 + $0xc] sm:$0xf]
    %v396 = vld [vmem:[%s391 + $0x10] sm:$0xf]
    %v397 = vld [vmem:[%s391 + $0x14] sm:$0xf]
    %v398 = vld [vmem:[%s391 + $0x18] sm:$0xf]
    %v399 = vld [vmem:[%s391 + $0x1c] sm:$0xf]
    %v400 = vld [vmem:[%s391 + $0x20] sm:$0xf]
    %v401 = vld [vmem:[%s391 + $0x24] sm:$0xf]
    %v402 = vld [vmem:[%s391 + $0x28] sm:$0xf]
    %v403 = vld [vmem:[%s391 + $0x2c] sm:$0xf]
    %v404 = vld [vmem:[%s391 + $0x30] sm:$0xf]
    %v405 = vld [vmem:[%s391 + $0x34] sm:$0xf]
    %v406 = vld [vmem:[%s391 + $0x38] sm:$0xf]
    %v407 = vld [vmem:[%s391 + $0x3c] sm:$0xf]
    %s408 = scalar_lea.vmem %s2, 3
    %v409 = vld [vmem:[%s408] sm:$0x1]
    %v411 = vlaneseq
    %v412 = vshrl.u32 %v411, 7
    %v413 = vsub.s32 0, %v412
    %v414 = vrot.slane %v409, %v413
    %v432 = vunpack.c.l.b16 %v392
    %v433 = vunpack.c.l.b16 %v393
    %v434 = vunpack.c.l.b16 %v394
    %v435 = vunpack.c.l.b16 %v395
    %v436 = vunpack.c.l.b16 %v396
    %v437 = vunpack.c.l.b16 %v397
    %v438 = vunpack.c.l.b16 %v398
    %v439 = vunpack.c.l.b16 %v399
    %v440 = vunpack.c.l.b16 %v400
    %v441 = vunpack.c.l.b16 %v401
    %v442 = vunpack.c.l.b16 %v402
    %v443 = vunpack.c.l.b16 %v403
    %v444 = vunpack.c.l.b16 %v404
    %v445 = vunpack.c.l.b16 %v405
    %v446 = vunpack.c.l.b16 %v406
    %v447 = vunpack.c.l.b16 %v407
    %v448 = vpack.c.b16 %v433, %v432
    %v449 = vpack.c.b16 %v435, %v434
    %v450 = vpack.c.b16 %v437, %v436
    %v451 = vpack.c.b16 %v439, %v438
    %v452 = vpack.c.b16 %v441, %v440
    %v453 = vpack.c.b16 %v443, %v442
    %v454 = vpack.c.b16 %v445, %v444
    %v455 = vpack.c.b16 %v447, %v446
    %464 = vmatprep.subr.bf16.mxu0 0
    %465 = vmatpush1.bf16.msra.mxu0 %v448
    %466 = vmatprep.subr.bf16.mxu0 0
    %467 = vmatpush1.bf16.msra.mxu0 %v449
    %468 = vmatprep.subr.bf16.mxu0 0
    %469 = vmatpush1.bf16.msra.mxu0 %v450
    %470 = vmatprep.subr.bf16.mxu0 0
    %471 = vmatpush1.bf16.msra.mxu0 %v451
    %472 = vmatprep.subr.bf16.mxu0 0
    %473 = vmatpush1.bf16.msra.mxu0 %v452
    %474 = vmatprep.subr.bf16.mxu0 0
    %475 = vmatpush1.bf16.msra.mxu0 %v453
    %476 = vmatprep.subr.bf16.mxu0 0
    %477 = vmatpush1.bf16.msra.mxu0 %v454
    %478 = vmatprep.subr.bf16.mxu0 0
    %479 = vmatpush1.bf16.msra.mxu0 %v455
    %480 = vmatprep.subr.bf16.mxu0 0
    %481 = vmatpush1.bf16.msra.mxu0 0
    %482 = vmatprep.subr.bf16.mxu0 0
    %483 = vmatpush1.bf16.msra.mxu0 0
    %484 = vmatprep.subr.bf16.mxu0 0
    %485 = vmatpush1.bf16.msra.mxu0 0
    %486 = vmatprep.subr.bf16.mxu0 0
    %487 = vmatpush1.bf16.msra.mxu0 0
    %488 = vmatprep.subr.bf16.mxu0 0
    %489 = vmatpush1.bf16.msra.mxu0 0
    %490 = vmatprep.subr.bf16.mxu0 0
    %491 = vmatpush1.bf16.msra.mxu0 0
    %492 = vmatprep.subr.bf16.mxu0 0
    %493 = vmatpush1.bf16.msra.mxu0 0
    %494 = vmatprep.subr.bf16.mxu0 0
    %495 = vmatpush1.bf16.msra.mxu0 0
    %496 = vmatprep.mubr.bf16.mxu0 0
    %497 = vmatmul.mubr.bf16.gmra.mrb[0].mxu0 %v390
    %v498 = vpop.f32.mrb[0].mxu0
    %v499 = vadd.f32 %v414, %v498
    %v500 = vpop.f32.mrb[0].mxu0
    %v501 = vpop.f32.mrb[0].mxu0
    %v502 = vpop.f32.mrb[0].mxu0
    %503 = vdwg.mxu0
    %vm504 = vcmask 523264
    %505 = vst.msk [vmem:[#allocation8] sm:$0xff] %vm504, %v499
    // Predicated region
    $region22: #{tpu_custom_call.1} parent=1 // pred_check
      _
    $region23: #{tpu_custom_call.1} parent=1 // pred_check_branch
      %507 = sbr.rel (0) target = $region25
    $region24: #{tpu_custom_call.1} parent=1 // pred_region
      %s509 = ssub.s32 128, 128
      %510 = vsyncadd [#allocation5], %s509
      %s512 = sshll.u32 [#allocation8], 4
      %s513 = int_to_ptr.vmem [resolvable:$true] %s512
      %515 = dma.vmem_to_hbm [thread:$0]  %s513, 128, %s3, [#allocation5]
    $region25: #{tpu_custom_call.1} parent=1 // pred_fallthru
      _
    // Predicated region
    $region26: #{tpu_custom_call.1} parent=1 // pred_check
      _
    $region27: #{tpu_custom_call.1} parent=1 // pred_check_branch
      %517 = sbr.rel (0) target = $region29
    $region28: #{tpu_custom_call.1} parent=1 // pred_region
      %518 = dma.done [#allocation5], 128
    $region29: #{tpu_custom_call.1} parent=1 // pred_fallthru
      _
    %519 = vsyncpa [#allocation4], 1
    %520 = vsyncpa [#allocation7], 1
    %521 = vsyncpa [#allocation5], 1

</llo_original>
